<compile_context>
chip_gen: v6e
topology: v6e:2x2x1
jax: 0.10.0
libtpu: 0.0.40
codegen_flags: <defaults>
</compile_context>

<pallas_src>
import functools
import math

import jax
import jax.numpy as jnp
from jax import lax
from jax.experimental import pallas as pl
from jax.experimental.pallas import tpu as pltpu


def _arcface_kernel(x_ref, w_ref, lab_ref, out_ref, xn_ref, *,
                    cos_m, sin_m, th, mm, scale):
    j = pl.program_id(1)                 # class-tile index (innermost grid axis)
    eps_sq = jnp.float32(1e-24)          # (1e-12)^2  -> matches F.normalize eps=1e-12

    # --- hoisted x-normalization: recompute only when a new batch tile starts ---
    @pl.when(j == 0)
    def _():
        x = x_ref[...]                                                     # (TB, D) f32
        inv = lax.rsqrt(jnp.maximum(jnp.sum(x * x, axis=-1, keepdims=True), eps_sq))
        xn_ref[...] = (x * inv).astype(xn_ref.dtype)                       # bf16 scratch

    # --- per-class-tile weight normalization (each weight tile streamed once) ---
    w = w_ref[...]                                                         # (TC, D) f32
    w_inv = lax.rsqrt(jnp.maximum(jnp.sum(w * w, axis=-1, keepdims=True), eps_sq))
    wn = (w * w_inv).astype(jnp.bfloat16)

    # cosine = xn @ wn.T via dot_general contracting D (no XLU transpose), MXU bf16 -> f32 acc.
    cosine = lax.dot_general(
        xn_ref[...], wn,
        dimension_numbers=(((1,), (1,)), ((), ())),
        preferred_element_type=jnp.float32)                                # (TB, TC) f32

    # --- ArcFace margin epilogue (f32, on the VPU) ---
    sine = jnp.sqrt(jnp.clip(1.0 - cosine * cosine, 0.0, 1.0))             # clamp vs fp rounding
    phi = cosine * jnp.float32(cos_m) - sine * jnp.float32(sin_m)
    phi = jnp.where(cosine > jnp.float32(th), phi, cosine - jnp.float32(mm))

    tb, tc = cosine.shape
    col = j * tc + lax.broadcasted_iota(jnp.int32, (tb, tc), 1)            # GLOBAL class index
    is_target = col == lab_ref[...]                                        # (TB,1) int32 broadcast
    out_ref[...] = (jnp.where(is_target, phi, cosine) * jnp.float32(scale)).astype(out_ref.dtype)


def _pick_tile(dim, unit, cap):
    """Largest tile <= cap that divides `dim` and is a multiple of `unit`.
    Falls back to the full dimension (always a legal block size)."""
    if dim % unit != 0:
        return dim
    t = min(cap, dim)
    t -= t % unit
    while dim % t != 0:
        t -= unit
    return t


def arcface_forward(x, weight, label, *, scale_factor=64.0, margin=0.5,
                    max_tb=256, max_tc=1024):
    """x: (B, D) f32, weight: (C, D) f32, label: (B,) int -> (B, C) f32 logits."""
    B, D = x.shape
    C, D2 = weight.shape
    assert D == D2, "feature dims must match"

    cos_m = math.cos(margin)
    sin_m = math.sin(margin)
    th = math.cos(math.pi - margin)
    mm = math.sin(math.pi - margin) * margin

    # Tile sizes: TB multiple of 8, TC multiple of 128 (lane-dense output stores).
    TB = _pick_tile(B, 8, max_tb)
    TC = _pick_tile(C, 128, max_tc)
    grid = (B // TB, C // TC)            # class axis innermost (x-norm hoist reuse)

    lab2d = label.reshape(B, 1).astype(jnp.int32)

    kernel = functools.partial(
        _arcface_kernel, cos_m=cos_m, sin_m=sin_m, th=th, mm=mm, scale=scale_factor
    )

    return pl.pallas_call(
        kernel,
        out_shape=jax.ShapeDtypeStruct((B, C), jnp.float32),
        grid_spec=pltpu.PrefetchScalarGridSpec(
            num_scalar_prefetch=0,
            grid=grid,
            in_specs=[
                pl.BlockSpec((TB, D), lambda i, j: (i, 0)),   # x: resident across class tiles
                pl.BlockSpec((TC, D), lambda i, j: (j, 0)),   # weight: streamed / pipelined
                pl.BlockSpec((TB, 1), lambda i, j: (i, 0)),   # labels for this batch tile
            ],
            out_specs=pl.BlockSpec((TB, TC), lambda i, j: (i, j)),
            scratch_shapes=[pltpu.VMEM((TB, D), jnp.bfloat16)],   # normalized-x cache
        ),
        compiler_params=pltpu.CompilerParams(
            # batch tiles are independent -> parallel (2 TCs on v7x);
            # class axis carries the xn scratch -> arbitrary (sequential).
            dimension_semantics=("parallel", "arbitrary"),
            # Fits comfortably within v7x's 64 MiB physical VMEM with the default tile caps.
            vmem_limit_bytes=48 * 1024 * 1024,
        ),
    )(x, weight, lab2d)


def _reference(x, weight, label, *, scale_factor=64.0, margin=0.5):
    """Pure-JAX reference mirroring the torch module (bf16 MXU operands, f32 epilogue)."""
    cos_m = math.cos(margin)
    sin_m = math.sin(margin)
    th = math.cos(math.pi - margin)
    mm = math.sin(math.pi - margin) * margin
    eps = 1e-12
    xn = x / jnp.maximum(jnp.linalg.norm(x, axis=1, keepdims=True), eps)
    wn = weight / jnp.maximum(jnp.linalg.norm(weight, axis=1, keepdims=True), eps)
    cosine = jnp.dot(xn.astype(jnp.bfloat16), wn.astype(jnp.bfloat16).T,
                     preferred_element_type=jnp.float32)
    sine = jnp.sqrt(jnp.clip(1.0 - cosine ** 2, 0.0, 1.0))
    phi = cosine * cos_m - sine * sin_m
    phi = jnp.where(cosine > th, phi, cosine - mm)
    one_hot = jax.nn.one_hot(label, weight.shape[0], dtype=cosine.dtype)
    return (one_hot * phi + (1.0 - one_hot) * cosine) * scale_factor


if __name__ == "__main__":
    B, D, C = 16, 64, 256  # batch, in_features, out_features (small test shapes)

    key = jax.random.PRNGKey(0)
    kx, kw, kl = jax.random.split(key, 3)

    x = jax.random.normal(kx, (B, D), dtype=jnp.float32)
    # Deterministic xavier_uniform-style init for weight (out_features, in_features).
    bound = math.sqrt(6.0 / (D + C))
    weight = jax.random.uniform(kw, (C, D), dtype=jnp.float32, minval=-bound, maxval=bound)
    label = jax.random.randint(kl, (B,), 0, C, dtype=jnp.int32)

    # Small tile caps so even these toy shapes exercise a (2, 2) tiled grid
    # (and hence the global class-index offset path).
    out = arcface_forward(x, weight, label, max_tb=8, max_tc=128)
    out = jax.block_until_ready(out)

    ref = _reference(x, weight, label)
    assert out.shape == (B, C)
    assert bool(jnp.all(jnp.isfinite(out)))
    max_err = float(jnp.max(jnp.abs(out - ref)))
    assert jnp.allclose(out, ref, atol=2e-2, rtol=2e-2), f"mismatch vs reference, max_err={max_err}"

    print("KERNEL_OK")
</pallas_src>

<mosaic_0001>
module attributes {stable_mosaic.version = 11 : i64} {
  func.func @_arcface_kernel(%arg0: i32, %arg1: i32, %arg2: memref<8x64xf32, #tpu.memory_space<vmem>>, %arg3: memref<128x64xf32, #tpu.memory_space<vmem>>, %arg4: memref<8x1xi32, #tpu.memory_space<vmem>>, %arg5: memref<8x128xf32, #tpu.memory_space<vmem>>, %arg6: memref<8x64xbf16, #tpu.memory_space<vmem>>) attributes {dimension_semantics = [#tpu.dimension_semantics<parallel>, #tpu.dimension_semantics<arbitrary>], iteration_bounds = array<i64: 2, 2>, scalar_prefetch = 0 : i64, scratch_operands = 1 : i64, tpu.core_type = #tpu.core_type<tc>, window_params = [{transform_indices = @transform_0, window_bounds = array<i64: 8, 64>}, {transform_indices = @transform_1, window_bounds = array<i64: 128, 64>}, {transform_indices = @transform_2, window_bounds = array<i64: 8, 1>}, {transform_indices = @transform_3, window_bounds = array<i64: 8, 128>}]} {
    %c0_i32 = arith.constant 0 : i32
    %0 = arith.cmpi eq, %arg1, %c0_i32 : i32
    %1 = arith.extui %0 : i1 to i32
    %cst = arith.constant 1.000000e-24 : f32
    %c0_i32_0 = arith.constant 0 : i32
    %2 = arith.cmpi ne, %1, %c0_i32_0 : i32
    scf.if %2 {
      %c0_19 = arith.constant 0 : index
      %c0_20 = arith.constant 0 : index
      %44 = vector.load %arg2[%c0_19, %c0_20] : memref<8x64xf32, #tpu.memory_space<vmem>>, vector<8x64xf32>
      %45 = arith.mulf %44, %44 : vector<8x64xf32>
      %cst_21 = arith.constant dense<0.000000e+00> : vector<8xf32>
      %46 = vector.multi_reduction <add>, %45, %cst_21 [1] : vector<8x64xf32> to vector<8xf32>
      %47 = vector.shape_cast %46 : vector<8xf32> to vector<8x1xf32>
      %48 = vector.broadcast %cst : f32 to vector<8x1xf32>
      %49 = arith.maximumf %47, %48 : vector<8x1xf32>
      %50 = math.rsqrt %49 : vector<8x1xf32>
      %51 = vector.broadcast %50 : vector<8x1xf32> to vector<8x64xf32>
      %52 = arith.mulf %44, %51 : vector<8x64xf32>
      %53 = arith.truncf %52 : vector<8x64xf32> to vector<8x64xbf16>
      %c0_22 = arith.constant 0 : index
      %c0_23 = arith.constant 0 : index
      %54 = vector.load %arg6[%c0_22, %c0_23] : memref<8x64xbf16, #tpu.memory_space<vmem>>, vector<8x64xbf16>
      tpu.vector_store %arg6[%c0_22, %c0_23], %53 {strides = array<i32>} : memref<8x64xbf16, #tpu.memory_space<vmem>>, vector<8x64xbf16>,
    } else {
    }
    %c0 = arith.constant 0 : index
    %c0_1 = arith.constant 0 : index
    %3 = vector.load %arg3[%c0, %c0_1] : memref<128x64xf32, #tpu.memory_space<vmem>>, vector<128x64xf32>
    %4 = arith.mulf %3, %3 : vector<128x64xf32>
    %cst_2 = arith.constant dense<0.000000e+00> : vector<128xf32>
    %5 = vector.multi_reduction <add>, %4, %cst_2 [1] : vector<128x64xf32> to vector<128xf32>
    %6 = vector.shape_cast %5 : vector<128xf32> to vector<128x1xf32>
    %cst_3 = arith.constant 1.000000e-24 : f32
    %7 = vector.broadcast %cst_3 : f32 to vector<128x1xf32>
    %8 = arith.maximumf %6, %7 : vector<128x1xf32>
    %9 = math.rsqrt %8 : vector<128x1xf32>
    %10 = vector.broadcast %9 : vector<128x1xf32> to vector<128x64xf32>
    %11 = arith.mulf %3, %10 : vector<128x64xf32>
    %12 = arith.truncf %11 : vector<128x64xf32> to vector<128x64xbf16>
    %c0_4 = arith.constant 0 : index
    %c0_5 = arith.constant 0 : index
    %13 = vector.load %arg6[%c0_4, %c0_5] : memref<8x64xbf16, #tpu.memory_space<vmem>>, vector<8x64xbf16>
    %cst_6 = arith.constant dense<0.000000e+00> : vector<8x128xf32>
    %14 = tpu.matmul %13, %12, %cst_6 {dimension_numbers = #tpu.dot_dimension_numbers<[1], [1], [0], [0], [0, 0, 1, 0], [], []>} : vector<8x64xbf16>, vector<128x64xbf16>, vector<8x128xf32> -> vector<8x128xf32>
    %15 = arith.mulf %14, %14 : vector<8x128xf32>
    %cst_7 = arith.constant 1.000000e+00 : f32
    %16 = vector.broadcast %cst_7 : f32 to vector<8x128xf32>
    %17 = arith.subf %16, %15 : vector<8x128xf32>
    %cst_8 = arith.constant 0.000000e+00 : f32
    %cst_9 = arith.constant 1.000000e+00 : f32
    %18 = vector.broadcast %cst_8 : f32 to vector<8x128xf32>
    %19 = arith.maximumf %18, %17 : vector<8x128xf32>
    %20 = vector.broadcast %cst_9 : f32 to vector<8x128xf32>
    %21 = arith.minimumf %20, %19 : vector<8x128xf32>
    %22 = math.sqrt %21 : vector<8x128xf32>
    %cst_10 = arith.constant 0.87758255 : f32
    %23 = vector.broadcast %cst_10 : f32 to vector<8x128xf32>
    %24 = arith.mulf %14, %23 : vector<8x128xf32>
    %cst_11 = arith.constant 0.47942555 : f32
    %25 = vector.broadcast %cst_11 : f32 to vector<8x128xf32>
    %26 = arith.mulf %22, %25 : vector<8x128xf32>
    %27 = arith.subf %24, %26 : vector<8x128xf32>
    %cst_12 = arith.constant -0.87758255 : f32
    %28 = vector.broadcast %cst_12 : f32 to vector<8x128xf32>
    %29 = arith.cmpf ogt, %14, %28 : vector<8x128xf32>
    %cst_13 = arith.constant 0.239712775 : f32
    %30 = vector.broadcast %cst_13 : f32 to vector<8x128xf32>
    %31 = arith.subf %14, %30 : vector<8x128xf32>
    %32 = arith.select %29, %27, %31 : vector<8x128xi1>, vector<8x128xf32>
    %c128_i32 = arith.constant 128 : i32
    %33 = arith.muli %arg1, %c128_i32 : i32
    %34 = tpu.iota {dimensions = array<i32: 1>} : vector<8x128xi32>
    %35 = vector.broadcast %33 : i32 to vector<8x128xi32>
    %36 = arith.addi %35, %34 : vector<8x128xi32>
    %c0_14 = arith.constant 0 : index
    %c0_15 = arith.constant 0 : index
    %37 = vector.load %arg4[%c0_14, %c0_15] : memref<8x1xi32, #tpu.memory_space<vmem>>, vector<8x1xi32>
    %38 = vector.broadcast %37 : vector<8x1xi32> to vector<8x128xi32>
    %39 = arith.cmpi eq, %36, %38 : vector<8x128xi32>
    %40 = arith.select %39, %32, %14 : vector<8x128xi1>, vector<8x128xf32>
    %cst_16 = arith.constant 6.400000e+01 : f32
    %41 = vector.broadcast %cst_16 : f32 to vector<8x128xf32>
    %42 = arith.mulf %40, %41 : vector<8x128xf32>
    %c0_17 = arith.constant 0 : index
    %c0_18 = arith.constant 0 : index
    %43 = vector.load %arg5[%c0_17, %c0_18] : memref<8x128xf32, #tpu.memory_space<vmem>>, vector<8x128xf32>
    tpu.vector_store %arg5[%c0_17, %c0_18], %42 {strides = array<i32>} : memref<8x128xf32, #tpu.memory_space<vmem>>, vector<8x128xf32>,
    return
  }
  func.func @transform_0(%arg0: i32, %arg1: i32) -> (i32, i32) {
    %c0_i32 = arith.constant 0 : i32
    %c0_i32_0 = arith.constant 0 : i32
    return %arg0, %c0_i32 : i32, i32
  }
  func.func @transform_1(%arg0: i32, %arg1: i32) -> (i32, i32) {
    %c0_i32 = arith.constant 0 : i32
    %c0_i32_0 = arith.constant 0 : i32
    return %arg1, %c0_i32 : i32, i32
  }
  func.func @transform_2(%arg0: i32, %arg1: i32) -> (i32, i32) {
    %c0_i32 = arith.constant 0 : i32
    %c0_i32_0 = arith.constant 0 : i32
    return %arg0, %c0_i32 : i32, i32
  }
  func.func @transform_3(%arg0: i32, %arg1: i32) -> (i32, i32) {
    %c0_i32 = arith.constant 0 : i32
    return %arg0, %arg1 : i32, i32
  }
}

</mosaic_0001>

<llo_original>
// kernel: tpu_custom_call.1
$region0: #{tpu_custom_call.1}
  #allocation0 [shape = 'u32[]', space=smem, size = 0x4, offset = 0x4, fixed_abs, tag = 'smem constant byte address 0x4 - core index']
  #allocation1 [shape = 'u32[144,128]{1,0:T(1,128)}', space=vmem, size = 0x12000, scoped, tag = 'internal scratch']
  #allocation2 [shape = 'bf16[8,64]{1,0:T(8,128)(2,1)}', space=vmem, size = 0x800, scoped, tag = 'scratch operand']
  %s0 = inlined_call_operand.vmem [shape: f32[16,64], index: 0, kind: input, shape index: {}]
  %s1 = inlined_call_operand.vmem [shape: f32[256,64], index: 1, kind: input, shape index: {}]
  %s2 = inlined_call_operand.vmem [shape: s32[16,1], index: 2, kind: input, shape index: {}]
  %s3 = inlined_call_operand.hbm [shape: f32[16,256], index: 3, kind: output, shape index: {}]
  %s4 = sld [smem:[#allocation0]]
  $region49: #{tpu_custom_call.1} parent=0
    _
  %s6 = ssub.s32 1, %s4
  %s7 = scalar_select 0, %s6, %s4
  $region1: #{tpu_custom_call.1} parent=0
    #allocation3 [shape = 'u8[8192]{0}', space=vmem, size = 0x2000, scoped, tag = 'output window, operand 0']
    #allocation4 [shape = 's32[2]{0}', space=sflag, size = 0x8, scoped, tag = 'scoped memory for tpu_custom_call.1']
    %8 = vsyncpa [#allocation4], 0
    %s9 = scalar_lea.sflag [#allocation4], 1
    %10 = vsyncpa %s9, 0
    loop: start=0, step=1, limit=6
    $region2: #{tpu_custom_call.1} parent=1 // loop_pre_header
      _
    $region3: #{tpu_custom_call.1} parent=1 // loop_header
      %s12 = sphi 0, %s16
      %p13 = scmp.ge.s32.totalorder %s12, 6
      %s19 = sphi 0, %s31
      %s20 = sphi 0, %s27
      %s21 = sphi 0, %s19
      %s22 = sphi 0, %s20
      %s23 = sphi 0, %s21
      %s24 = sphi 0, %s22
      %s34 = sphi 0, %s36
      %s37 = sphi 0, %s34
      %s38 = sphi 0, %s37
      %s54 = sphi 0, %s38
      %s60 = sphi 0, %s62
      %s63 = sphi 0, %s60
      %s64 = sphi 0, %s63
      %s80 = sphi 0, %s64
      %s86 = sphi 0, %s88
      %s89 = sphi 0, %s86
      %s90 = sphi 0, %s89
      %s106 = sphi 0, %s90
      %s114 = sphi 0, %s116
      %s117 = sphi 0, %s114
      %s118 = sphi 0, %s117
      %s134 = sphi 0, %s118
    $region4: #{tpu_custom_call.1} parent=1 // loop_header_branch
      %15 = sbr.rel (%p13) target = $region8
    $region5: #{tpu_custom_call.1} parent=1 // loop_body
      %s17 = ssub.s32 %s12, 1
      %s18 = ssub.s32 %s12, 2
      %s25 = sadd.s32 1, %s20
      %p26 = scmp.ge.s32.totalorder %s25, 2
      %s27 = scalar_select %p26, 0, %s25
      %s28 = sadd.s32 1, %s19
      %s29 = scalar_select %p26, %s28, %s19
      %p30 = scmp.ge.s32.totalorder %s29, 2
      %s31 = scalar_select %p30, 0, %s29
      %s32 = ssub.s32 %s19, %s31
      %p33 = scmp.eq.s32.totalorder %s32, 0
      %s35 = sadd.s32 %s34, 1
      %s36 = scalar_select %p33, %s34, %s35
      %p39 = pneg %p33
      %p40 = scmp.eq.s32.totalorder %s12, 3
      %p41 = por %p39, %p40
      %p42 = scmp.ne.s32.totalorder %s34, %s37
      %p43 = scmp.eq.s32.totalorder %s12, 0
      %p44 = por %p42, %p43
      %p45 = scmp.ne.s32.totalorder %s34, %s37
      %p46 = scmp.eq.s32.totalorder %s17, 3
      %p47 = por %p45, %p46
      %p48 = scmp.ne.s32.totalorder %s37, %s38
      %p49 = scmp.eq.s32.totalorder %s17, 0
      %p50 = por %p48, %p49
      %p51 = scmp.ne.s32.totalorder %s37, %s38
      %p52 = scmp.eq.s32.totalorder %s18, 3
      %p53 = por %p51, %p52
      %p55 = scmp.ne.s32.totalorder %s38, %s54
      %p56 = scmp.eq.s32.totalorder %s18, 0
      %p57 = por %p55, %p56
      %s58 = ssub.s32 %s20, %s27
      %p59 = scmp.eq.s32.totalorder %s58, 0
      %s61 = sadd.s32 %s60, 1
      %s62 = scalar_select %p59, %s60, %s61
      %p65 = pneg %p59
      %p66 = scmp.eq.s32.totalorder %s12, 3
      %p67 = por %p65, %p66
      %p68 = scmp.ne.s32.totalorder %s60, %s63
      %p69 = scmp.eq.s32.totalorder %s12, 0
      %p70 = por %p68, %p69
      %p71 = scmp.ne.s32.totalorder %s60, %s63
      %p72 = scmp.eq.s32.totalorder %s17, 3
      %p73 = por %p71, %p72
      %p74 = scmp.ne.s32.totalorder %s63, %s64
      %p75 = scmp.eq.s32.totalorder %s17, 0
      %p76 = por %p74, %p75
      %p77 = scmp.ne.s32.totalorder %s63, %s64
      %p78 = scmp.eq.s32.totalorder %s18, 3
      %p79 = por %p77, %p78
      %p81 = scmp.ne.s32.totalorder %s64, %s80
      %p82 = scmp.eq.s32.totalorder %s18, 0
      %p83 = por %p81, %p82
      %s84 = ssub.s32 %s19, %s31
      %p85 = scmp.eq.s32.totalorder %s84, 0
      %s87 = sadd.s32 %s86, 1
      %s88 = scalar_select %p85, %s86, %s87
      %p91 = pneg %p85
      %p92 = scmp.eq.s32.totalorder %s12, 3
      %p93 = por %p91, %p92
      %p94 = scmp.ne.s32.totalorder %s86, %s89
      %p95 = scmp.eq.s32.totalorder %s12, 0
      %p96 = por %p94, %p95
      %p97 = scmp.ne.s32.totalorder %s86, %s89
      %p98 = scmp.eq.s32.totalorder %s17, 3
      %p99 = por %p97, %p98
      %p100 = scmp.ne.s32.totalorder %s89, %s90
      %p101 = scmp.eq.s32.totalorder %s17, 0
      %p102 = por %p100, %p101
      %p103 = scmp.ne.s32.totalorder %s89, %s90
      %p104 = scmp.eq.s32.totalorder %s18, 3
      %p105 = por %p103, %p104
      %p107 = scmp.ne.s32.totalorder %s90, %s106
      %p108 = scmp.eq.s32.totalorder %s18, 0
      %p109 = por %p107, %p108
      %s110 = ssub.s32 %s19, %s31
      %s111 = ssub.s32 %s20, %s27
      %s112 = sor.u32 %s110, %s111
      %p113 = scmp.eq.s32.totalorder %s112, 0
      %s115 = sadd.s32 %s114, 1
      %s116 = scalar_select %p113, %s114, %s115
      %p119 = pneg %p113
      %p120 = scmp.eq.s32.totalorder %s12, 3
      %p121 = por %p119, %p120
      %p122 = scmp.ne.s32.totalorder %s114, %s117
      %p123 = scmp.eq.s32.totalorder %s12, 0
      %p124 = por %p122, %p123
      %p125 = scmp.ne.s32.totalorder %s114, %s117
      %p126 = scmp.eq.s32.totalorder %s17, 3
      %p127 = por %p125, %p126
      %p128 = scmp.ne.s32.totalorder %s117, %s118
      %p129 = scmp.eq.s32.totalorder %s17, 0
      %p130 = por %p128, %p129
      %p131 = scmp.ne.s32.totalorder %s117, %s118
      %p132 = scmp.eq.s32.totalorder %s18, 3
      %p133 = por %p131, %p132
      %p135 = scmp.ne.s32.totalorder %s118, %s134
      %p136 = scmp.eq.s32.totalorder %s18, 0
      %p137 = por %p135, %p136
      %p138 = scmp.le.s32.totalorder 1, %s12
      %p139 = scmp.lt.s32.totalorder %s12, 5
      %p140 = pnand %p138, %p139
      %p141 = pneg %p140
      // Predicated region
      $region9: #{tpu_custom_call.1} parent=5 // pred_check
        _
      $region10: #{tpu_custom_call.1} parent=5 // pred_check_branch
        %143 = sbr.rel (%p140) target = $region12
      $region11: #{tpu_custom_call.1} parent=5 // pred_region
        %s144 = ssub.s32 %s12, 1
      $region12: #{tpu_custom_call.1} parent=5 // pred_fallthru
        _
      %p145 = scmp.lt.s32.totalorder %s12, 4
      // Predicated region
      $region13: #{tpu_custom_call.1} parent=5 // pred_check
        %p146 = pneg %p145
      $region14: #{tpu_custom_call.1} parent=5 // pred_check_branch
        %148 = sbr.rel (%p146) target = $region16
      $region15: #{tpu_custom_call.1} parent=5 // pred_region
        // Predicated region
        $region17: #{tpu_custom_call.1} parent=15 // pred_check
          %p149 = pneg %p44
        $region18: #{tpu_custom_call.1} parent=15 // pred_check_branch
          %151 = sbr.rel (%p149) target = $region20
        $region19: #{tpu_custom_call.1} parent=15 // pred_region
          %p152 = scmp.lt.s32.totalorder %s19, 1
          %s153 = scalar_select %p152, %s19, 1
          %s154 = smul.addr %s153, 8
          %s155 = scalar_lea.vmem %s0, %s154
        $region20: #{tpu_custom_call.1} parent=15 // pred_fallthru
          _
        // Predicated region
        $region21: #{tpu_custom_call.1} parent=15 // pred_check
          %p156 = pneg %p70
        $region22: #{tpu_custom_call.1} parent=15 // pred_check_branch
          %158 = sbr.rel (%p156) target = $region24
        $region23: #{tpu_custom_call.1} parent=15 // pred_region
          %s159 = smul.u32 16, %s20
          %p160 = scmp.lt.s32.totalorder %s159, 31
          %s161 = scalar_select %p160, %s159, 31
          %s162 = smul.addr %s161, 8
          %s163 = scalar_lea.vmem %s1, %s162
          %s164 = smul.u32 16, %s20
        $region24: #{tpu_custom_call.1} parent=15 // pred_fallthru
          _
        // Predicated region
        $region25: #{tpu_custom_call.1} parent=15 // pred_check
          %p165 = pneg %p96
        $region26: #{tpu_custom_call.1} parent=15 // pred_check_branch
          %167 = sbr.rel (%p165) target = $region28
        $region27: #{tpu_custom_call.1} parent=15 // pred_region
          %p168 = scmp.lt.s32.totalorder %s19, 1
          %s169 = scalar_select %p168, %s19, 1
          %s170 = smul.addr %s169, 8
          %s171 = scalar_lea.vmem %s2, %s170
        $region28: #{tpu_custom_call.1} parent=15 // pred_fallthru
          _
      $region16: #{tpu_custom_call.1} parent=5 // pred_fallthru
        _
      %p172 = scmp.le.s32.totalorder 1, %s12
      %p173 = scmp.lt.s32.totalorder %s12, 5
      %p174 = pnand %p172, %p173
      %p175 = pneg %p174
      // Predicated region
      $region29: #{tpu_custom_call.1} parent=5 // pred_check
        _
      $region30: #{tpu_custom_call.1} parent=5 // pred_check_branch
        %177 = sbr.rel (%p174) target = $region32
      $region31: #{tpu_custom_call.1} parent=5 // pred_region
        %s178 = ssub.s32 %s12, 1
        %p179 = scmp.lt.s32.totalorder %s21, 1
        %s180 = scalar_select %p179, %s21, 1
        %s181 = smul.addr %s180, 8
        %s182 = scalar_lea.vmem %s0, %s181
        %p183 = pneg %p50
        %p184 = pneg %p47
        %s185 = smul.u32 16, %s22
        %p186 = scmp.lt.s32.totalorder %s185, 31
        %s187 = scalar_select %p186, %s185, 31
        %s188 = smul.addr %s187, 8
        %s189 = scalar_lea.vmem %s1, %s188
        %p190 = pneg %p76
        %p191 = pneg %p73
        %p192 = scmp.lt.s32.totalorder %s21, 1
        %s193 = scalar_select %p192, %s21, 1
        %s194 = smul.addr %s193, 8
        %s195 = scalar_lea.vmem %s2, %s194
        %p196 = pneg %p102
        %p197 = pneg %p99
        %p198 = pneg %p130
        %p199 = pneg %p127
        %s200 = sand.u32 %s117, 1
        %s201 = scalar_lea.sflag [#allocation4], %s200
        %s202 = sand.u32 %s117, 1
        %s203 = smul.addr %s202, 8
        %s204 = scalar_lea.vmem [#allocation3], %s203
        %p205 = scmp.lt.s32.totalorder %s21, 1
        %s206 = scalar_select %p205, %s21, 1
        %s207 = smul.addr %s206, 8
        %s208 = scalar_lea.vmem %s0, %s207
        %s209 = smul.u32 16, %s22
        %p210 = scmp.lt.s32.totalorder %s209, 31
        %s211 = scalar_select %p210, %s209, 31
        %s212 = smul.addr %s211, 8
        %s213 = scalar_lea.vmem %s1, %s212
        %s214 = smul.u32 16, %s22
        %p215 = scmp.lt.s32.totalorder %s21, 1
        %s216 = scalar_select %p215, %s21, 1
        %s217 = smul.addr %s216, 8
        %s218 = scalar_lea.vmem %s2, %s217
        %p220 = scmp.eq.s32.totalorder %s22, 0
        // Predicated region
        $region33: #{tpu_custom_call.1} parent=31 // pred_check
          %p221 = pneg %p220
        $region34: #{tpu_custom_call.1} parent=31 // pred_check_branch
          %223 = sbr.rel (%p221) target = $region36
        $region35: #{tpu_custom_call.1} parent=31 // pred_region
          %v224 = vld [vmem:[%s208] sm:$0xff]
          %v225 = vmul.f32 %v224, %v224
          %vm226 = vcmask 523264
          %v227 = vsel %vm226, %v225, 0.0
          %228 = vadd.xlane.f32.xlu0 %v227
          %v229 = vpop.xlane.xlu0 %228
          %v230 = vmax.f32 %v229, 1e-24
          %v231 = vrsqrt.pop %v230
          %v232 = vmul.f32 %v224, %v231
          %v233 = vpack.c.bf16 %v232, %v232
          %vm234 = vcmask 519168
          %235 = vst.msk [vmem:[#allocation2] sm:$0xf] %vm234, %v233
        $region36: #{tpu_custom_call.1} parent=31 // pred_fallthru
          _
        %v236 = vld [vmem:[%s213] sm:$0xff]
        %v237 = vld [vmem:[%s213 + $0x8] sm:$0xff]
        %v238 = vld [vmem:[%s213 + $0x10] sm:$0xff]
        %v239 = vld [vmem:[%s213 + $0x18] sm:$0xff]
        %v240 = vld [vmem:[%s213 + $0x20] sm:$0xff]
        %v241 = vld [vmem:[%s213 + $0x28] sm:$0xff]
        %v242 = vld [vmem:[%s213 + $0x30] sm:$0xff]
        %v243 = vld [vmem:[%s213 + $0x38] sm:$0xff]
        %v244 = vld [vmem:[%s213 + $0x40] sm:$0xff]
        %v245 = vld [vmem:[%s213 + $0x48] sm:$0xff]
        %v246 = vld [vmem:[%s213 + $0x50] sm:$0xff]
        %v247 = vld [vmem:[%s213 + $0x58] sm:$0xff]
        %v248 = vld [vmem:[%s213 + $0x60] sm:$0xff]
        %v249 = vld [vmem:[%s213 + $0x68] sm:$0xff]
        %v250 = vld [vmem:[%s213 + $0x70] sm:$0xff]
        %v251 = vld [vmem:[%s213 + $0x78] sm:$0xff]
        %v252 = vmul.f32 %v236, %v236
        %v253 = vmul.f32 %v237, %v237
        %v254 = vmul.f32 %v238, %v238
        %v255 = vmul.f32 %v239, %v239
        %v256 = vmul.f32 %v240, %v240
        %v257 = vmul.f32 %v241, %v241
        %v258 = vmul.f32 %v242, %v242
        %v259 = vmul.f32 %v243, %v243
        %v260 = vmul.f32 %v244, %v244
        %v261 = vmul.f32 %v245, %v245
        %v262 = vmul.f32 %v246, %v246
        %v263 = vmul.f32 %v247, %v247
        %v264 = vmul.f32 %v248, %v248
        %v265 = vmul.f32 %v249, %v249
        %v266 = vmul.f32 %v250, %v250
        %v267 = vmul.f32 %v251, %v251
        %vm268 = vcmask 523264
        %v269 = vsel %vm268, %v252, 0.0
        %270 = vadd.xlane.f32.xlu0 %v269
        %v271 = vpop.xlane.xlu0 %270
        %v272 = vsel %vm268, %v253, 0.0
        %273 = vadd.xlane.f32.xlu0 %v272
        %v274 = vpop.xlane.xlu0 %273
        %v275 = vsel %vm268, %v254, 0.0
        %276 = vadd.xlane.f32.xlu0 %v275
        %v277 = vpop.xlane.xlu0 %276
        %v278 = vsel %vm268, %v255, 0.0
        %279 = vadd.xlane.f32.xlu0 %v278
        %v280 = vpop.xlane.xlu0 %279
        %v281 = vsel %vm268, %v256, 0.0
        %282 = vadd.xlane.f32.xlu0 %v281
        %v283 = vpop.xlane.xlu0 %282
        %v284 = vsel %vm268, %v257, 0.0
        %285 = vadd.xlane.f32.xlu0 %v284
        %v286 = vpop.xlane.xlu0 %285
        %v287 = vsel %vm268, %v258, 0.0
        %288 = vadd.xlane.f32.xlu0 %v287
        %v289 = vpop.xlane.xlu0 %288
        %v290 = vsel %vm268, %v259, 0.0
        %291 = vadd.xlane.f32.xlu0 %v290
        %v292 = vpop.xlane.xlu0 %291
        %v293 = vsel %vm268, %v260, 0.0
        %294 = vadd.xlane.f32.xlu0 %v293
        %v295 = vpop.xlane.xlu0 %294
        %v296 = vsel %vm268, %v261, 0.0
        %297 = vadd.xlane.f32.xlu0 %v296
        %v298 = vpop.xlane.xlu0 %297
        %v299 = vsel %vm268, %v262, 0.0
        %300 = vadd.xlane.f32.xlu0 %v299
        %v301 = vpop.xlane.xlu0 %300
        %v302 = vsel %vm268, %v263, 0.0
        %303 = vadd.xlane.f32.xlu0 %v302
        %v304 = vpop.xlane.xlu0 %303
        %v305 = vsel %vm268, %v264, 0.0
        %306 = vadd.xlane.f32.xlu0 %v305
        %v307 = vpop.xlane.xlu0 %306
        %v308 = vsel %vm268, %v265, 0.0
        %309 = vadd.xlane.f32.xlu0 %v308
        %v310 = vpop.xlane.xlu0 %309
        %v311 = vsel %vm268, %v266, 0.0
        %312 = vadd.xlane.f32.xlu0 %v311
        %v313 = vpop.xlane.xlu0 %312
        %v314 = vsel %vm268, %v267, 0.0
        %315 = vadd.xlane.f32.xlu0 %v314
        %v316 = vpop.xlane.xlu0 %315
        %v317 = vmax.f32 %v271, 1e-24
        %v318 = vmax.f32 %v274, 1e-24
        %v319 = vmax.f32 %v277, 1e-24
        %v320 = vmax.f32 %v280, 1e-24
        %v321 = vmax.f32 %v283, 1e-24
        %v322 = vmax.f32 %v286, 1e-24
        %v323 = vmax.f32 %v289, 1e-24
        %v324 = vmax.f32 %v292, 1e-24
        %v325 = vmax.f32 %v295, 1e-24
        %v326 = vmax.f32 %v298, 1e-24
        %v327 = vmax.f32 %v301, 1e-24
        %v328 = vmax.f32 %v304, 1e-24
        %v329 = vmax.f32 %v307, 1e-24
        %v330 = vmax.f32 %v310, 1e-24
        %v331 = vmax.f32 %v313, 1e-24
        %v332 = vmax.f32 %v316, 1e-24
        %v333 = vrsqrt.pop %v317
        %v334 = vrsqrt.pop %v318
        %v335 = vrsqrt.pop %v319
        %v336 = vrsqrt.pop %v320
        %v337 = vrsqrt.pop %v321
        %v338 = vrsqrt.pop %v322
        %v339 = vrsqrt.pop %v323
        %v340 = vrsqrt.pop %v324
        %v341 = vrsqrt.pop %v325
        %v342 = vrsqrt.pop %v326
        %v343 = vrsqrt.pop %v327
        %v344 = vrsqrt.pop %v328
        %v345 = vrsqrt.pop %v329
        %v346 = vrsqrt.pop %v330
        %v347 = vrsqrt.pop %v331
        %v348 = vrsqrt.pop %v332
        %v349 = vmul.f32 %v236, %v333
        %v350 = vmul.f32 %v237, %v334
        %v351 = vmul.f32 %v238, %v335
        %v352 = vmul.f32 %v239, %v336
        %v353 = vmul.f32 %v240, %v337
        %v354 = vmul.f32 %v241, %v338
        %v355 = vmul.f32 %v242, %v339
        %v356 = vmul.f32 %v243, %v340
        %v357 = vmul.f32 %v244, %v341
        %v358 = vmul.f32 %v245, %v342
        %v359 = vmul.f32 %v246, %v343
        %v360 = vmul.f32 %v247, %v344
        %v361 = vmul.f32 %v248, %v345
        %v362 = vmul.f32 %v249, %v346
        %v363 = vmul.f32 %v250, %v347
        %v364 = vmul.f32 %v251, %v348
        %v365 = vpack.c.bf16 %v350, %v349
        %v366 = vpack.c.bf16 %v352, %v351
        %v367 = vpack.c.bf16 %v354, %v353
        %v368 = vpack.c.bf16 %v356, %v355
        %v369 = vpack.c.bf16 %v358, %v357
        %v370 = vpack.c.bf16 %v360, %v359
        %v371 = vpack.c.bf16 %v362, %v361
        %v372 = vpack.c.bf16 %v364, %v363
        %v373 = vld [vmem:[#allocation2] sm:$0xf]
        %v375 = vsel %vm268, %v373, 0
        %v378 = vsel %vm268, %v365, 0
        %v381 = vsel %vm268, %v366, 0
        %v384 = vsel %vm268, %v367, 0
        %v387 = vsel %vm268, %v368, 0
        %v390 = vsel %vm268, %v369, 0
        %v393 = vsel %vm268, %v370, 0
        %v396 = vsel %vm268, %v371, 0
        %v399 = vsel %vm268, %v372, 0
        %401 = vmatprep.subr.bf16.mxu0 0
        %402 = vmatpush1.bf16.xpose.msra.mxu0 %v399
        %403 = vmatprep.subr.bf16.mxu0 0
        %404 = vmatpush1.bf16.xpose.msra.mxu0 %v396
        %405 = vmatprep.subr.bf16.mxu0 0
        %406 = vmatpush1.bf16.xpose.msra.mxu0 %v393
        %407 = vmatprep.subr.bf16.mxu0 0
        %408 = vmatpush1.bf16.xpose.msra.mxu0 %v390
        %409 = vmatprep.subr.bf16.mxu0 0
        %410 = vmatpush1.bf16.xpose.msra.mxu0 %v387
        %411 = vmatprep.subr.bf16.mxu0 0
        %412 = vmatpush1.bf16.xpose.msra.mxu0 %v384
        %413 = vmatprep.subr.bf16.mxu0 0
        %414 = vmatpush1.bf16.xpose.msra.mxu0 %v381
        %415 = vmatprep.subr.bf16.mxu0 0
        %416 = vmatpush1.bf16.xpose.msra.mxu0 %v378
        %417 = vmatprep.subr.bf16.mxu0 0
        %418 = vmatpush2.bf16.xpose.msra.mxu0 0
        %419 = vmatprep.subr.bf16.mxu0 0
        %420 = vmatpush2.bf16.xpose.msra.mxu0 0
        %421 = vmatprep.subr.bf16.mxu0 0
        %422 = vmatpush2.bf16.xpose.msra.mxu0 0
        %423 = vmatprep.subr.bf16.mxu0 0
        %424 = vmatpush2.bf16.xpose.msra.mxu0 0
        %425 = vmatprep.subr.bf16.mxu0 0
        %426 = vmatpush2.bf16.xpose.msra.mxu0 0
        %427 = vmatprep.subr.bf16.mxu0 0
        %428 = vmatpush2.bf16.xpose.msra.mxu0 0
        %429 = vmatprep.subr.bf16.mxu0 0
        %430 = vmatpush2.bf16.xpose.msra.mxu0 0
        %431 = vmatprep.subr.bf16.mxu0 0
        %432 = vmatpush2.bf16.xpose.msra.mxu0 0
        %433 = vmatprep.mubr.bf16.mxu0 0
        %434 = vmatmul.mubr.bf16.gmra.mxu0 %v375
        %v435 = vpop.f32.mrf.mxu0
        %v436 = vadd.f32 0.0, %v435
        %v437 = vpop.f32.mrf.mxu0
        %v438 = vpop.f32.mrf.mxu0
        %v439 = vpop.f32.mrf.mxu0
        %440 = vdwg.mxu0
        %v441 = vmul.f32 %v436, %v436
        %v442 = vsub.f32 1.0, %v441
        %v443 = vmax.f32 %v442, 0.0
        %v444 = vmin.f32 %v443, 1.0
        %v445 = vrsqrt.pop %v444
        %v446 = vmul.f32 %v444, %v445
        %vm447 = vcmp.eq.f32.partialorder %v444, inf
        %v448 = vsel %vm447, %v444, %v446
        %vm449 = vcmp.eq.f32.partialorder %v444, 0.0
        %v450 = vand.u32 %v444, 2147483648
        %v451 = vsel %vm449, %v450, %v448
        %v452 = vmul.f32 %v436, 0.87758255
        %v453 = vmul.f32 %v451, 0.47942555
        %v454 = vsub.f32 %v452, %v453
        %vm455 = vcmp.gt.f32.partialorder %v436, -0.87758255
        %v456 = vsub.f32 %v436, 0.23971277
        %v457 = vsel %vm455, %v454, %v456
        %s458 = smul.u32 %s22, 128
        %v459 = vlaneseq
        %v460 = vand.u32 %v459, 127
        %v461 = vstv %s458
        %v462 = vadd.s32 %v461, %v460
        %v463 = vld [vmem:[%s218] sm:$0xff]
        %464 = vset.pattern.permute.xlu0 0
        %465 = vperm.xlu0 %464, %v463
        %v466 = vpop.permute.xlu0 %465
        %vm467 = vcmp.eq.s32.totalorder %v462, %v466
        %v468 = vsel %vm467, %v457, %v436
        %v469 = vmul.f32 %v468, 64.0
        %470 = vst [vmem:[%s204] sm:$0xff] %v469
        %s471 = sand.u32 %s117, 1
        %s472 = scalar_lea.sflag [#allocation4], %s471
        %s473 = sand.u32 %s117, 1
        %s474 = smul.addr %s473, 8
        %s475 = scalar_lea.vmem [#allocation3], %s474
        // Predicated region
        $region37: #{tpu_custom_call.1} parent=31 // pred_check
          %p476 = pneg %p127
        $region38: #{tpu_custom_call.1} parent=31 // pred_check_branch
          %478 = sbr.rel (%p476) target = $region40
        $region39: #{tpu_custom_call.1} parent=31 // pred_region
          %s480 = ssub.s32 128, 128
          %481 = vsyncadd %s472, %s480
          %s482 = smul.addr %s21, 2
          %s483 = sadd.s32 %s22, %s482
          %s484 = smul.addr %s483, 128
          %s485 = scalar_lea.hbm %s3, %s484
          %s487 = sshll.u32 %s475, 4
          %s488 = int_to_ptr.vmem [resolvable:$true] %s487
          %490 = dma.vmem_to_hbm [thread:$0]  %s488, 128, %s485, %s472
        $region40: #{tpu_custom_call.1} parent=31 // pred_fallthru
          _
      $region32: #{tpu_custom_call.1} parent=5 // pred_fallthru
        _
      %p491 = scmp.le.s32.totalorder 2, %s12
      // Predicated region
      $region41: #{tpu_custom_call.1} parent=5 // pred_check
        %p492 = pneg %p491
      $region42: #{tpu_custom_call.1} parent=5 // pred_check_branch
        %494 = sbr.rel (%p492) target = $region44
      $region43: #{tpu_custom_call.1} parent=5 // pred_region
        %s495 = ssub.s32 %s12, 2
        // Predicated region
        $region45: #{tpu_custom_call.1} parent=43 // pred_check
          %p496 = pneg %p133
        $region46: #{tpu_custom_call.1} parent=43 // pred_check_branch
          %498 = sbr.rel (%p496) target = $region48
        $region47: #{tpu_custom_call.1} parent=43 // pred_region
          %s499 = sand.u32 %s118, 1
          %s500 = scalar_lea.sflag [#allocation4], %s499
          %s501 = sand.u32 %s118, 1
          %s502 = smul.addr %s501, 8
          %s503 = scalar_lea.vmem [#allocation3], %s502
          %504 = dma.done %s500, 128
        $region48: #{tpu_custom_call.1} parent=43 // pred_fallthru
          _
      $region44: #{tpu_custom_call.1} parent=5 // pred_fallthru
        _
    $region6: #{tpu_custom_call.1} parent=1 // loop_footer
      %s16 = sadd.s32 1, %s12
    $region7: #{tpu_custom_call.1} parent=1 // loop_footer_branch
      %11 = sbr.rel target = $region3
    $region8: #{tpu_custom_call.1} parent=1 // loop_exit
      _
    %505 = vsyncpa [#allocation4], 1
    %s506 = scalar_lea.sflag [#allocation4], 1
    %507 = vsyncpa %s506, 1

</llo_original>
